<compile_context>
chip_gen: v7x
topology: tpu7x:2x2x1
jax: 0.10.0
libtpu: 0.0.40
codegen_flags: <defaults>
</compile_context>

<pallas_src>
import functools

import jax
import jax.numpy as jnp
from jax import lax
from jax.experimental import pallas as pl
from jax.experimental.pallas import tpu as pltpu


def _int_pow(x, k):
    """x**k for a static non-negative int k via repeated multiplies (pure VPU)."""
    if k == 0:
        return jnp.ones_like(x)
    result = None
    base = x
    while k:
        if k & 1:
            result = base if result is None else result * base
        k >>= 1
        if k:
            base = base * base
    return result


def _focal_loss_kernel(logits_ref, targets_ref, out_ref, *, alpha, gamma):
    """Per-sample focal loss for one (TN, C) tile of logits."""
    logits = logits_ref[...].astype(jnp.float32)           # (TN, C) f32
    tgt = targets_ref[...]                                  # (TN, 1) int32

    # Numerically-stable log-softmax cross entropy:
    #   ce = logsumexp(logits) - logits[target]
    m = jnp.max(logits, axis=-1, keepdims=True)              # (TN, 1)
    lse = m + jnp.log(jnp.sum(jnp.exp(logits - m), axis=-1, keepdims=True))

    # Gather logits[target] via one-hot mask (no dynamic gather on TPU VPU).
    col = lax.broadcasted_iota(jnp.int32, logits.shape, 1)    # (TN, C)
    picked = jnp.sum(jnp.where(col == tgt, logits, 0.0), axis=-1, keepdims=True)

    # Clamp ce >= 0 so pt <= 1: avoids (negative)**gamma NaN from rounding.
    ce = jnp.maximum(lse - picked, 0.0)                       # (TN, 1)
    pt = jnp.exp(-ce)
    base = 1.0 - pt                                           # in [0, 1)

    g = float(gamma)
    if g >= 0.0 and g == int(g):
        mod = _int_pow(base, int(g))                          # VPU only
    else:
        # Generic positive power: exp(gamma*log(base)), safe at base == 0.
        safe = jnp.maximum(base, 1e-30)
        powed = jnp.exp(g * jnp.log(safe))
        mod = jnp.where(base > 0.0, powed, 0.0)

    out_ref[...] = alpha * mod * ce                           # (TN, 1) f32


def _pick_block_rows(n, c, itemsize, block_rows=None):
    """Rows per tile: fits a double-buffered logits tile in a conservative VMEM budget."""
    if block_rows is None:
        budget = 4 * 1024 * 1024                      # bytes for 2x (TN, C) input buffers
        tn = budget // (2 * c * itemsize)
        tn = max(8, min(1024, (tn // 8) * 8))         # multiple of 8 (sublane rule)
    else:
        tn = max(8, (int(block_rows) // 8) * 8)
    if tn >= n:
        tn = n                                        # full-dim block: no divisibility needed
    return tn


def focal_loss(inputs, targets, *, alpha=0.25, gamma=2, reduce=True, block_rows=None):
    """Pallas TPU implementation of FocalLoss.forward.

    inputs:  (N, C) float logits (any float dtype; streamed as-is, upcast in-kernel)
    targets: (N,)   int class indices
    """
    n, c = inputs.shape
    targets2d = targets.astype(jnp.int32).reshape(n, 1)

    tn = _pick_block_rows(n, c, jnp.dtype(inputs.dtype).itemsize, block_rows)
    grid = (pl.cdiv(n, tn),)

    kernel = functools.partial(_focal_loss_kernel, alpha=float(alpha), gamma=gamma)

    per_sample = pl.pallas_call(
        kernel,
        out_shape=jax.ShapeDtypeStruct((n, 1), jnp.float32),
        grid=grid,
        in_specs=[
            pl.BlockSpec((tn, c), lambda i: (i, 0)),
            pl.BlockSpec((tn, 1), lambda i: (i, 0)),
        ],
        out_specs=pl.BlockSpec((tn, 1), lambda i: (i, 0)),
        compiler_params=pltpu.CompilerParams(
            dimension_semantics=("parallel",),
            vmem_limit_bytes=32 * 1024 * 1024,
        ),
    )(inputs, targets2d)

    per_sample = per_sample[:, 0]
    if reduce:
        return jnp.mean(per_sample)
    return per_sample


def _focal_loss_ref(inputs, targets, *, alpha=0.25, gamma=2, reduce=True):
    """Plain-JAX reference for validation."""
    logits = inputs.astype(jnp.float32)
    logz = jax.scipy.special.logsumexp(logits, axis=-1)
    picked = jnp.take_along_axis(logits, targets[:, None].astype(jnp.int32), axis=-1)[:, 0]
    ce = logz - picked
    pt = jnp.exp(-ce)
    f = alpha * (1.0 - pt) ** gamma * ce
    return jnp.mean(f) if reduce else f


if __name__ == "__main__":
    key = jax.random.PRNGKey(0)
    k1, k2, k3, k4 = jax.random.split(key, 4)

    # Small case (single tile), matching the module's classification use.
    N, C = 8, 32
    inputs = jax.random.normal(k1, (N, C), dtype=jnp.float32)
    targets = jax.random.randint(k2, (N,), 0, C, dtype=jnp.int32)

    loss = jax.block_until_ready(focal_loss(inputs, targets, alpha=0.25, gamma=2, reduce=True))
    loss_vec = jax.block_until_ready(focal_loss(inputs, targets, alpha=0.25, gamma=2, reduce=False))
    assert jnp.allclose(loss, _focal_loss_ref(inputs, targets, reduce=True), rtol=1e-5, atol=1e-5)
    assert jnp.allclose(loss_vec, _focal_loss_ref(inputs, targets, reduce=False), rtol=1e-5, atol=1e-5)

    # Non-integer gamma path (generic power, clamped base).
    loss_g = jax.block_until_ready(focal_loss(inputs, targets, gamma=1.5))
    assert jnp.allclose(loss_g, _focal_loss_ref(inputs, targets, gamma=1.5), rtol=1e-5, atol=1e-5)

    # bf16 logits streamed directly (kernel upcasts in VMEM; halves HBM read bytes).
    inputs_bf16 = inputs.astype(jnp.bfloat16)
    loss_bf16 = jax.block_until_ready(focal_loss(inputs_bf16, targets))
    assert jnp.allclose(loss_bf16, _focal_loss_ref(inputs_bf16, targets), rtol=1e-5, atol=1e-5)

    # Multi-tile case with a ragged last tile (exercises pipelined grid + edge masking).
    N2, C2 = 200, 32
    inputs2 = jax.random.normal(k3, (N2, C2), dtype=jnp.float32)
    targets2 = jax.random.randint(k4, (N2,), 0, C2, dtype=jnp.int32)
    loss2 = jax.block_until_ready(focal_loss(inputs2, targets2, block_rows=64))
    vec2 = jax.block_until_ready(focal_loss(inputs2, targets2, reduce=False, block_rows=64))
    assert jnp.allclose(loss2, _focal_loss_ref(inputs2, targets2, reduce=True), rtol=1e-5, atol=1e-5)
    assert jnp.allclose(vec2, _focal_loss_ref(inputs2, targets2, reduce=False), rtol=1e-5, atol=1e-5)

    print("KERNEL_OK")
</pallas_src>

<mosaic_0001>
module attributes {stable_mosaic.version = 11 : i64} {
  func.func @_focal_loss_kernel(%arg0: i32, %arg1: memref<8x32xf32, #tpu.memory_space<vmem>>, %arg2: memref<8x1xi32, #tpu.memory_space<vmem>>, %arg3: memref<8x1xf32, #tpu.memory_space<vmem>>) attributes {dimension_semantics = [#tpu.dimension_semantics<parallel>], iteration_bounds = array<i64: 1>, scalar_prefetch = 0 : i64, scratch_operands = 0 : i64, tpu.core_type = #tpu.core_type<tc>, window_params = [{transform_indices = @transform_0, window_bounds = array<i64: 8, 32>}, {transform_indices = @transform_1, window_bounds = array<i64: 8, 1>}, {transform_indices = @transform_2, window_bounds = array<i64: 8, 1>}]} {
    %c0 = arith.constant 0 : index
    %c0_0 = arith.constant 0 : index
    %0 = vector.load %arg1[%c0, %c0_0] : memref<8x32xf32, #tpu.memory_space<vmem>>, vector<8x32xf32>
    %c0_1 = arith.constant 0 : index
    %c0_2 = arith.constant 0 : index
    %1 = vector.load %arg2[%c0_1, %c0_2] : memref<8x1xi32, #tpu.memory_space<vmem>>, vector<8x1xi32>
    %cst = arith.constant dense<0xFF800000> : vector<8xf32>
    %2 = vector.multi_reduction <maximumf>, %0, %cst [1] : vector<8x32xf32> to vector<8xf32>
    %3 = vector.shape_cast %2 : vector<8xf32> to vector<8x1xf32>
    %4 = vector.broadcast %3 : vector<8x1xf32> to vector<8x32xf32>
    %5 = arith.subf %0, %4 : vector<8x32xf32>
    %6 = math.exp %5 : vector<8x32xf32>
    %cst_3 = arith.constant dense<0.000000e+00> : vector<8xf32>
    %7 = vector.multi_reduction <add>, %6, %cst_3 [1] : vector<8x32xf32> to vector<8xf32>
    %8 = vector.shape_cast %7 : vector<8xf32> to vector<8x1xf32>
    %9 = math.log %8 : vector<8x1xf32>
    %10 = arith.addf %3, %9 : vector<8x1xf32>
    %11 = tpu.iota {dimensions = array<i32: 1>} : vector<8x32xi32>
    %12 = vector.broadcast %1 : vector<8x1xi32> to vector<8x32xi32>
    %13 = arith.cmpi eq, %11, %12 : vector<8x32xi32>
    %cst_4 = arith.constant 0.000000e+00 : f32
    %14 = vector.broadcast %cst_4 : f32 to vector<8x32xf32>
    %15 = arith.select %13, %0, %14 : vector<8x32xi1>, vector<8x32xf32>
    %cst_5 = arith.constant dense<0.000000e+00> : vector<8xf32>
    %16 = vector.multi_reduction <add>, %15, %cst_5 [1] : vector<8x32xf32> to vector<8xf32>
    %17 = vector.shape_cast %16 : vector<8xf32> to vector<8x1xf32>
    %18 = arith.subf %10, %17 : vector<8x1xf32>
    %cst_6 = arith.constant 0.000000e+00 : f32
    %19 = vector.broadcast %cst_6 : f32 to vector<8x1xf32>
    %20 = arith.maximumf %18, %19 : vector<8x1xf32>
    %cst_7 = arith.constant 0.000000e+00 : f32
    %21 = vector.broadcast %cst_7 : f32 to vector<8x1xf32>
    %22 = arith.subf %21, %20 : vector<8x1xf32>
    %23 = math.exp %22 : vector<8x1xf32>
    %cst_8 = arith.constant 1.000000e+00 : f32
    %24 = vector.broadcast %cst_8 : f32 to vector<8x1xf32>
    %25 = arith.subf %24, %23 : vector<8x1xf32>
    %26 = arith.mulf %25, %25 : vector<8x1xf32>
    %cst_9 = arith.constant 2.500000e-01 : f32
    %27 = vector.broadcast %cst_9 : f32 to vector<8x1xf32>
    %28 = arith.mulf %27, %26 : vector<8x1xf32>
    %29 = arith.mulf %28, %20 : vector<8x1xf32>
    %c0_10 = arith.constant 0 : index
    %c0_11 = arith.constant 0 : index
    %30 = vector.load %arg3[%c0_10, %c0_11] : memref<8x1xf32, #tpu.memory_space<vmem>>, vector<8x1xf32>
    tpu.vector_store %arg3[%c0_10, %c0_11], %29 {strides = array<i32>} : memref<8x1xf32, #tpu.memory_space<vmem>>, vector<8x1xf32>,
    return
  }
  func.func @transform_0(%arg0: i32) -> (i32, i32) {
    %c0_i32 = arith.constant 0 : i32
    %c0_i32_0 = arith.constant 0 : i32
    return %arg0, %c0_i32 : i32, i32
  }
  func.func @transform_1(%arg0: i32) -> (i32, i32) {
    %c0_i32 = arith.constant 0 : i32
    %c0_i32_0 = arith.constant 0 : i32
    return %arg0, %c0_i32 : i32, i32
  }
  func.func @transform_2(%arg0: i32) -> (i32, i32) {
    %c0_i32 = arith.constant 0 : i32
    %c0_i32_0 = arith.constant 0 : i32
    return %arg0, %c0_i32 : i32, i32
  }
}

</mosaic_0001>

<llo_original>
// kernel: tpu_custom_call.1
$region0: #{tpu_custom_call.1}
  #allocation0 [shape = 'u32[]', space=smem, size = 0x4, offset = 0x4, fixed_abs, tag = 'smem constant byte address 0x4 - core index']
  #allocation1 [shape = 'u32[144,128]{1,0:T(1,128)}', space=vmem, size = 0x12000, scoped, tag = 'internal scratch']
  %s0 = inlined_call_operand.vmem [shape: f32[8,32], index: 0, kind: input, shape index: {}]
  %s1 = inlined_call_operand.vmem [shape: s32[8,1], index: 1, kind: input, shape index: {}]
  %s2 = inlined_call_operand.vmem [shape: f32[8,1], index: 2, kind: output, shape index: {}]
  %s3 = sld [smem:[#allocation0]]
  $region18: #{tpu_custom_call.1} parent=0
    _
  %s5 = ssub.s32 1, %s3
  %s6 = scalar_select 0, %s5, %s3
  // Predicated region
  $region2: #{tpu_custom_call.1} parent=0 // pred_check
    _
  $region3: #{tpu_custom_call.1} parent=0 // pred_check_branch
    %8 = sbr.rel (0) target = $region5
  $region4: #{tpu_custom_call.1} parent=0 // pred_region
    _
  $region5: #{tpu_custom_call.1} parent=0 // pred_fallthru
    _
  // Predicated region
  $region6: #{tpu_custom_call.1} parent=0 // pred_check
    _
  $region7: #{tpu_custom_call.1} parent=0 // pred_check_branch
    %10 = sbr.rel (0) target = $region9
  $region8: #{tpu_custom_call.1} parent=0 // pred_region
    _
  $region9: #{tpu_custom_call.1} parent=0 // pred_fallthru
    _
  %v11 = vld [vmem:[%s0] sm:$0xff]
  %v12 = vld [vmem:[%s1] sm:$0xff]
  %vm13 = vcmask 261120
  %v14 = vsel %vm13, %v11, -inf
  %15 = vmax.xlane.f32.xlu0 %v14
  %v16 = vpop.xlane.xlu0 %15
  %v17 = vsub.f32 %v11, %v16
  %v18 = vmul.f32 %v17, 1.442695
  %v19 = vpow.pop %v18
  %v20 = vsel %vm13, %v19, 0.0
  %21 = vadd.xlane.f32.xlu0 %v20
  %v22 = vpop.xlane.xlu0 %21
  %v23 = vlog2.pop %v22
  %v24 = vmul.f32 %v23, 0.6931472
  %v25 = vadd.f32 %v16, %v24
  %v26 = vlaneseq
  %v27 = vand.u32 %v26, 127
  %28 = vset.pattern.permute.xlu0 0
  %29 = vperm.xlu0 %28, %v12
  %v30 = vpop.permute.xlu0 %29
  %vm31 = vcmp.eq.s32.totalorder %v27, %v30
  %v32 = vsel %vm31, %v11, 0.0
  %v33 = vsel %vm13, %v32, 0.0
  %34 = vadd.xlane.f32.xlu0 %v33
  %v35 = vpop.xlane.xlu0 %34
  %v36 = vsub.f32 %v25, %v35
  %v37 = vmax.f32 %v36, 0.0
  %v38 = vsub.f32 0.0, %v37
  %v39 = vmul.f32 %v38, 1.442695
  %v40 = vpow.pop %v39
  %v41 = vsub.f32 1.0, %v40
  %v42 = vmul.f32 %v41, %v41
  %v43 = vmul.f32 %v42, 0.25
  %v44 = vmul.f32 %v43, %v37
  %vm45 = vcmask 7168
  %46 = vst.msk [vmem:[%s2] sm:$0xff] %vm45, %v44
  // Predicated region
  $region10: #{tpu_custom_call.1} parent=0 // pred_check
    _
  $region11: #{tpu_custom_call.1} parent=0 // pred_check_branch
    %48 = sbr.rel (0) target = $region13
  $region12: #{tpu_custom_call.1} parent=0 // pred_region
    _
  $region13: #{tpu_custom_call.1} parent=0 // pred_fallthru
    _
  // Predicated region
  $region14: #{tpu_custom_call.1} parent=0 // pred_check
    _
  $region15: #{tpu_custom_call.1} parent=0 // pred_check_branch
    %50 = sbr.rel (0) target = $region17
  $region16: #{tpu_custom_call.1} parent=0 // pred_region
    _
  $region17: #{tpu_custom_call.1} parent=0 // pred_fallthru
    _

</llo_original>
